<compile_context>
chip_gen: v5e
topology: v5e:2x2
jax: 0.10.0
libtpu: 0.0.40
codegen_flags: <defaults>
</compile_context>

<pallas_src>
import functools

import jax
import jax.numpy as jnp
from jax.experimental import pallas as pl
from jax.experimental.pallas import tpu as pltpu

HIDDEN = 128


# --------------------------------------------------------------------------- #
# Kernel
# --------------------------------------------------------------------------- #
def actor_critic_kernel(x_ref, w2_ref, wh_ref, slab_ref, out_ref, *, num_floors):
    x = x_ref[...]                                   # (bb, 1) f32
    slab = slab_ref[...]                             # (4, 128) f32: w1 row, b1, b2, head bias
    w1_row = slab[0:1, :]                            # (1, 128)
    b1 = slab[1:2, :]
    b2 = slab[2:3, :]
    bh = slab[3:4, :]                                # fused head bias (zero-padded)

    # fc1: K=1 contraction -> VPU broadcast multiply (no MXU round-trip).
    h1 = jnp.maximum(x * w1_row + b1, 0.0)           # (bb, 128) f32

    # MXU input dtype follows the packed weight dtype (f32 validation / bf16 deploy);
    # accumulation stays f32 via preferred_element_type.
    mxu_dtype = w2_ref.dtype

    # fc2 on the MXU.
    h2 = jnp.maximum(
        jnp.dot(h1.astype(mxu_dtype), w2_ref[...],
                preferred_element_type=jnp.float32) + b2, 0.0)

    # Fused heads: lanes [0, nf) = actor logits, lane nf = critic value, rest zero.
    head = jnp.dot(h2.astype(mxu_dtype), wh_ref[...],
                   preferred_element_type=jnp.float32) + bh

    lane = jax.lax.broadcasted_iota(jnp.int32, head.shape, 1)
    actor_mask = lane < num_floors

    # Softmax restricted to the actor lanes; padded lanes exp(-inf) to exactly 0.
    logits = jnp.where(actor_mask, head, -jnp.inf)
    m = jnp.max(logits, axis=-1, keepdims=True)
    e = jnp.exp(logits - m)
    # approx=False: EUP approximate reciprocal error can exceed the 1e-5 tolerance.
    probs = e * pl.reciprocal(jnp.sum(e, axis=-1, keepdims=True), approx=False)

    # Lane-dense packed output: probs in [0,nf), value at lane nf, zeros elsewhere.
    out_ref[...] = (probs + jnp.where(lane == num_floors, head, 0.0)).astype(out_ref.dtype)


# --------------------------------------------------------------------------- #
# One-time operand packing (hoisted out of the per-call path)
# --------------------------------------------------------------------------- #
def pack_params(params, *, mxu_dtype=jnp.float32):
    """Build the kernel operands ONCE per parameter update.

    Returns a dict holding:
      w2   : (128,128) fc2 weight, dtype=mxu_dtype
      wh   : (128,128) fused actor/critic head weight (zero padded), dtype=mxu_dtype
      slab : (4,128) f32 [w1 row, b1, b2, fused head bias]
      num_floors : python int
    Use mxu_dtype=jnp.bfloat16 for deployment (4x MXU rate on v6e/v7x); keep the
    default f32 for 1e-5-tolerance validation.
    """
    H = HIDDEN
    nf = int(params["wa"].shape[1])
    # TODO(synk): head fusion assumes num_floors + 1 <= 128 lanes (true for elevators).
    assert nf + 1 <= H, "fused head packing requires num_floors + 1 <= 128"

    wh = (jnp.zeros((H, H), jnp.float32)
          .at[:, :nf].set(params["wa"])
          .at[:, nf:nf + 1].set(params["wc"]))                         # (128, 128)
    bh = (jnp.zeros((1, H), jnp.float32)
          .at[:, :nf].set(params["ba"])
          .at[:, nf:nf + 1].set(params["bc"]))                         # (1, 128)
    slab = jnp.concatenate(
        [params["w1"].reshape(1, H), params["b1"], params["b2"], bh], axis=0)  # (4,128)

    return {
        "w2": params["w2"].astype(mxu_dtype),
        "wh": wh.astype(mxu_dtype),
        "slab": slab,                     # biases/softmax path stays f32
        "num_floors": nf,
    }


# --------------------------------------------------------------------------- #
# Wrapper
# --------------------------------------------------------------------------- #
def _round_up(n, m):
    return ((n + m - 1) // m) * m


def _device_kind():
    try:
        return jax.devices()[0].device_kind.lower()
    except Exception:
        return ""


def _resident_spec(block_shape):
    """Grid-invariant (weight-like) operand: constant block index; request
    single-buffering if this JAX exposes pipeline_mode (frees dead 2nd buffer)."""
    index_map = lambda i: (0,) * len(block_shape)
    try:
        return pl.BlockSpec(block_shape, index_map, pipeline_mode=pl.Buffered(1))
    except TypeError:
        return pl.BlockSpec(block_shape, index_map)


def actor_critic_forward(x, packed, *, block_b=2048, out_dtype=jnp.float32,
                         return_packed=False):
    """x: (B, 1) float32.  packed: output of pack_params().

    return_packed=False -> (probs (B, num_floors) , value (B, 1))   [validation path]
    return_packed=True  -> packed (Bp, 128) slab: probs in lanes [0,nf), value in
                           lane nf (deployment path, no wrapper slicing).
    """
    B = int(x.shape[0])
    H = HIDDEN
    nf = packed["num_floors"]

    kind = _device_kind()
    is_v7x = ("v7" in kind) or ("7x" in kind)
    is_v5e = ("v5" in kind) and (("lite" in kind) or ("v5e" in kind))

    # --- batch tiling -----------------------------------------------------
    if B <= block_b:
        if is_v7x and B >= 256:
            # Split so the "parallel" grid axis actually shards across both TCs.
            bb = _round_up((B + 1) // 2, 128)
        elif is_v5e and B >= 128:
            # Full 128-row M-tiles for v5e's 4x128x128 MXU.
            bb = min(_round_up(B, 128), block_b)
        else:
            bb = max(8, _round_up(B, 8))
    else:
        bb = block_b                       # keep a multiple of 256
    Bp = _round_up(B, bb)
    xp = x if Bp == B else jnp.pad(x, ((0, Bp - B), (0, 0)))

    kernel = functools.partial(actor_critic_kernel, num_floors=nf)

    w_itemsize = jnp.dtype(packed["w2"].dtype).itemsize
    out_itemsize = jnp.dtype(out_dtype).itemsize
    flops = int(2 * Bp * H + 4 * Bp * H * H + 6 * Bp * H)
    bytes_accessed = int(Bp * 4 + 2 * H * H * w_itemsize + 4 * H * 4
                         + Bp * H * out_itemsize)

    out = pl.pallas_call(
        kernel,
        out_shape=jax.ShapeDtypeStruct((Bp, H), out_dtype),
        grid_spec=pltpu.PrefetchScalarGridSpec(
            num_scalar_prefetch=0,
            grid=(Bp // bb,),
            in_specs=[
                pl.BlockSpec((bb, 1), lambda i: (i, 0)),   # x (batch-tiled)
                _resident_spec((H, H)),                    # w2
                _resident_spec((H, H)),                    # fused head weight
                _resident_spec((4, H)),                    # w1 row + biases slab
            ],
            out_specs=pl.BlockSpec((bb, H), lambda i: (i, 0)),
        ),
        compiler_params=pltpu.CompilerParams(
            dimension_semantics=("parallel",)),
        cost_estimate=pl.CostEstimate(
            flops=flops, transcendentals=int(Bp * H), bytes_accessed=bytes_accessed),
    )(xp, packed["w2"], packed["wh"], packed["slab"])

    if return_packed:
        return out                          # (Bp, 128): lanes [0,nf)=probs, lane nf=value
    probs = out[:B, :nf]
    value = out[:B, nf:nf + 1]
    return probs, value


# --------------------------------------------------------------------------- #
# Params / reference
# --------------------------------------------------------------------------- #
def init_params(key, num_floors, hidden=HIDDEN):
    # Mimic PyTorch nn.Linear default init: U(-1/sqrt(fan_in), 1/sqrt(fan_in)).
    def linear(key, fan_in, fan_out):
        kw, kb = jax.random.split(key)
        bound = 1.0 / jnp.sqrt(jnp.float32(fan_in))
        w = jax.random.uniform(kw, (fan_in, fan_out), jnp.float32, -bound, bound)
        b = jax.random.uniform(kb, (1, fan_out), jnp.float32, -bound, bound)
        return w, b

    k1, k2, k3, k4 = jax.random.split(key, 4)
    w1, b1 = linear(k1, 1, hidden)
    w2, b2 = linear(k2, hidden, hidden)
    wa, ba = linear(k3, hidden, num_floors)
    wc, bc = linear(k4, hidden, 1)
    return {"w1": w1, "b1": b1, "w2": w2, "b2": b2,
            "wa": wa, "ba": ba, "wc": wc, "bc": bc}


def reference_forward(x, p):
    h1 = jnp.maximum(x @ p["w1"] + p["b1"], 0.0)
    h2 = jnp.maximum(h1 @ p["w2"] + p["b2"], 0.0)
    logits = h2 @ p["wa"] + p["ba"]
    probs = jax.nn.softmax(logits, axis=-1)
    value = h2 @ p["wc"] + p["bc"]
    return probs, value


if __name__ == "__main__":
    key = jax.random.PRNGKey(0)
    k_params, k_x = jax.random.split(key)

    num_floors = 10
    batch = 8

    params = init_params(k_params, num_floors)
    x = jax.random.uniform(k_x, (batch, 1), jnp.float32)   # state vector, (B, 1)
    ref_probs, ref_value = reference_forward(x, params)

    # ---- f32 validation path (packing done ONCE, outside the per-call path) ----
    packed_f32 = pack_params(params)                        # once per param update
    probs, value = actor_critic_forward(x, packed_f32)
    jax.block_until_ready((probs, value))

    assert probs.shape == (batch, num_floors)
    assert value.shape == (batch, 1)
    assert jnp.allclose(probs, ref_probs, atol=1e-5, rtol=1e-5)
    assert jnp.allclose(value, ref_value, atol=1e-5, rtol=1e-5)
    assert jnp.allclose(jnp.sum(probs, axis=-1), 1.0, atol=1e-5)

    # ---- bf16 deployment path: bf16 MXU weights + packed lane-dense output ----
    packed_bf16 = pack_params(params, mxu_dtype=jnp.bfloat16)
    out_slab = actor_critic_forward(x, packed_bf16, return_packed=True)
    jax.block_until_ready(out_slab)
    probs_b = out_slab[:batch, :num_floors]
    value_b = out_slab[:batch, num_floors:num_floors + 1]
    assert jnp.allclose(jnp.sum(probs_b, axis=-1), 1.0, atol=1e-2)
    assert jnp.allclose(probs_b, ref_probs, atol=5e-2)
    assert jnp.allclose(value_b, ref_value, atol=5e-2)

    print("KERNEL_OK")
</pallas_src>

<mosaic_0001>
module attributes {stable_mosaic.version = 11 : i64} {
  func.func @actor_critic_kernel(%arg0: i32, %arg1: memref<8x1xf32, #tpu.memory_space<vmem>>, %arg2: memref<128x128xf32, #tpu.memory_space<vmem>>, %arg3: memref<128x128xf32, #tpu.memory_space<vmem>>, %arg4: memref<4x128xf32, #tpu.memory_space<vmem>>, %arg5: memref<8x128xf32, #tpu.memory_space<vmem>>) attributes {dimension_semantics = [#tpu.dimension_semantics<parallel>], iteration_bounds = array<i64: 1>, scalar_prefetch = 0 : i64, scratch_operands = 0 : i64, tpu.core_type = #tpu.core_type<tc>, window_params = [{transform_indices = @transform_0, window_bounds = array<i64: 8, 1>}, {pipeline_mode = #tpu.pipeline_mode<synchronous>, transform_indices = @transform_1, window_bounds = array<i64: 128, 128>}, {pipeline_mode = #tpu.pipeline_mode<synchronous>, transform_indices = @transform_2, window_bounds = array<i64: 128, 128>}, {pipeline_mode = #tpu.pipeline_mode<synchronous>, transform_indices = @transform_3, window_bounds = array<i64: 4, 128>}, {transform_indices = @transform_4, window_bounds = array<i64: 8, 128>}]} {
    %c0 = arith.constant 0 : index
    %c0_0 = arith.constant 0 : index
    %0 = vector.load %arg1[%c0, %c0_0] : memref<8x1xf32, #tpu.memory_space<vmem>>, vector<8x1xf32>
    %c0_1 = arith.constant 0 : index
    %c0_2 = arith.constant 0 : index
    %1 = vector.load %arg4[%c0_1, %c0_2] : memref<4x128xf32, #tpu.memory_space<vmem>>, vector<4x128xf32>
    %2 = vector.extract_strided_slice %1 {offsets = [0, 0], sizes = [1, 128], strides = [1, 1]} : vector<4x128xf32> to vector<1x128xf32>
    %3 = vector.extract_strided_slice %1 {offsets = [1, 0], sizes = [1, 128], strides = [1, 1]} : vector<4x128xf32> to vector<1x128xf32>
    %4 = vector.extract_strided_slice %1 {offsets = [2, 0], sizes = [1, 128], strides = [1, 1]} : vector<4x128xf32> to vector<1x128xf32>
    %5 = vector.extract_strided_slice %1 {offsets = [3, 0], sizes = [1, 128], strides = [1, 1]} : vector<4x128xf32> to vector<1x128xf32>
    %6 = vector.broadcast %0 : vector<8x1xf32> to vector<8x128xf32>
    %7 = vector.broadcast %2 : vector<1x128xf32> to vector<8x128xf32>
    %8 = arith.mulf %6, %7 : vector<8x128xf32>
    %9 = vector.broadcast %3 : vector<1x128xf32> to vector<8x128xf32>
    %10 = arith.addf %8, %9 : vector<8x128xf32>
    %cst = arith.constant 0.000000e+00 : f32
    %11 = vector.broadcast %cst : f32 to vector<8x128xf32>
    %12 = arith.maximumf %10, %11 : vector<8x128xf32>
    %c0_3 = arith.constant 0 : index
    %c0_4 = arith.constant 0 : index
    %13 = vector.load %arg2[%c0_3, %c0_4] : memref<128x128xf32, #tpu.memory_space<vmem>>, vector<128x128xf32>
    %cst_5 = arith.constant dense<0.000000e+00> : vector<8x128xf32>
    %14 = tpu.matmul %12, %13, %cst_5 {dimension_numbers = #tpu.dot_dimension_numbers<[1], [0], [0], [1], [0, 0, 1, 1], [], []>} : vector<8x128xf32>, vector<128x128xf32>, vector<8x128xf32> -> vector<8x128xf32>
    %15 = vector.broadcast %4 : vector<1x128xf32> to vector<8x128xf32>
    %16 = arith.addf %14, %15 : vector<8x128xf32>
    %cst_6 = arith.constant 0.000000e+00 : f32
    %17 = vector.broadcast %cst_6 : f32 to vector<8x128xf32>
    %18 = arith.maximumf %16, %17 : vector<8x128xf32>
    %c0_7 = arith.constant 0 : index
    %c0_8 = arith.constant 0 : index
    %19 = vector.load %arg3[%c0_7, %c0_8] : memref<128x128xf32, #tpu.memory_space<vmem>>, vector<128x128xf32>
    %cst_9 = arith.constant dense<0.000000e+00> : vector<8x128xf32>
    %20 = tpu.matmul %18, %19, %cst_9 {dimension_numbers = #tpu.dot_dimension_numbers<[1], [0], [0], [1], [0, 0, 1, 1], [], []>} : vector<8x128xf32>, vector<128x128xf32>, vector<8x128xf32> -> vector<8x128xf32>
    %21 = vector.broadcast %5 : vector<1x128xf32> to vector<8x128xf32>
    %22 = arith.addf %20, %21 : vector<8x128xf32>
    %23 = tpu.iota {dimensions = array<i32: 1>} : vector<8x128xi32>
    %c10_i32 = arith.constant 10 : i32
    %24 = vector.broadcast %c10_i32 : i32 to vector<8x128xi32>
    %25 = arith.cmpi slt, %23, %24 : vector<8x128xi32>
    %cst_10 = arith.constant 0xFF800000 : f32
    %26 = vector.broadcast %cst_10 : f32 to vector<8x128xf32>
    %27 = arith.select %25, %22, %26 : vector<8x128xi1>, vector<8x128xf32>
    %cst_11 = arith.constant dense<0xFF800000> : vector<8xf32>
    %28 = vector.multi_reduction <maximumf>, %27, %cst_11 [1] : vector<8x128xf32> to vector<8xf32>
    %29 = vector.shape_cast %28 : vector<8xf32> to vector<8x1xf32>
    %30 = vector.broadcast %29 : vector<8x1xf32> to vector<8x128xf32>
    %31 = arith.subf %27, %30 : vector<8x128xf32>
    %32 = math.exp %31 : vector<8x128xf32>
    %cst_12 = arith.constant dense<0.000000e+00> : vector<8xf32>
    %33 = vector.multi_reduction <add>, %32, %cst_12 [1] : vector<8x128xf32> to vector<8xf32>
    %34 = vector.shape_cast %33 : vector<8xf32> to vector<8x1xf32>
    %35 = tpu.reciprocal %34 : vector<8x1xf32> -> vector<8x1xf32>
    %36 = vector.broadcast %35 : vector<8x1xf32> to vector<8x128xf32>
    %37 = arith.mulf %32, %36 : vector<8x128xf32>
    %c10_i32_13 = arith.constant 10 : i32
    %38 = vector.broadcast %c10_i32_13 : i32 to vector<8x128xi32>
    %39 = arith.cmpi eq, %23, %38 : vector<8x128xi32>
    %cst_14 = arith.constant 0.000000e+00 : f32
    %40 = vector.broadcast %cst_14 : f32 to vector<8x128xf32>
    %41 = arith.select %39, %22, %40 : vector<8x128xi1>, vector<8x128xf32>
    %42 = arith.addf %37, %41 : vector<8x128xf32>
    %c0_15 = arith.constant 0 : index
    %c0_16 = arith.constant 0 : index
    %43 = vector.load %arg5[%c0_15, %c0_16] : memref<8x128xf32, #tpu.memory_space<vmem>>, vector<8x128xf32>
    tpu.vector_store %arg5[%c0_15, %c0_16], %42 {strides = array<i32>} : memref<8x128xf32, #tpu.memory_space<vmem>>, vector<8x128xf32>,
    return
  }
  func.func @transform_0(%arg0: i32) -> (i32, i32) {
    %c0_i32 = arith.constant 0 : i32
    %c0_i32_0 = arith.constant 0 : i32
    return %arg0, %c0_i32 : i32, i32
  }
  func.func @transform_1(%arg0: i32) -> (i32, i32) {
    %c0_i32 = arith.constant 0 : i32
    %c0_i32_0 = arith.constant 0 : i32
    %c0_i32_1 = arith.constant 0 : i32
    return %c0_i32, %c0_i32_0 : i32, i32
  }
  func.func @transform_2(%arg0: i32) -> (i32, i32) {
    %c0_i32 = arith.constant 0 : i32
    %c0_i32_0 = arith.constant 0 : i32
    %c0_i32_1 = arith.constant 0 : i32
    return %c0_i32, %c0_i32_0 : i32, i32
  }
  func.func @transform_3(%arg0: i32) -> (i32, i32) {
    %c0_i32 = arith.constant 0 : i32
    %c0_i32_0 = arith.constant 0 : i32
    %c0_i32_1 = arith.constant 0 : i32
    return %c0_i32, %c0_i32_0 : i32, i32
  }
  func.func @transform_4(%arg0: i32) -> (i32, i32) {
    %c0_i32 = arith.constant 0 : i32
    %c0_i32_0 = arith.constant 0 : i32
    return %arg0, %c0_i32 : i32, i32
  }
}

</mosaic_0001>

<llo_original>
// kernel: tpu_custom_call.1
$region0: #{tpu_custom_call.1}
  #allocation0 [shape = 'u32[]', space=smem, size = 0x4, offset = 0x4, fixed_abs, tag = 'smem constant byte address 0x4 - core index']
  #allocation1 [shape = 'u32[72,128]{1,0:T(1,128)}', space=vmem, size = 0x9000, scoped, tag = 'internal scratch']
  %s0 = inlined_call_operand.vmem [shape: f32[8,1], index: 0, kind: input, shape index: {}]
  %s1 = inlined_call_operand.hbm [shape: f32[128,128], index: 1, kind: input, shape index: {}]
  %s2 = inlined_call_operand.hbm [shape: f32[128,128], index: 2, kind: input, shape index: {}]
  %s3 = inlined_call_operand.vmem [shape: f32[4,128], index: 3, kind: input, shape index: {}]
  %s4 = inlined_call_operand.hbm [shape: f32[8,128], index: 4, kind: output, shape index: {}]
  %s5 = sld [smem:[#allocation0]]
  $region34: #{tpu_custom_call.1} parent=0
    _
  %s7 = ssub.s32 1, %s5
  %s8 = scalar_select 0, %s7, %s5
  $region1: #{tpu_custom_call.1} parent=0
    #allocation2 [shape = 'u8[65536]{0}', space=vmem, size = 0x10000, scoped, tag = 'input window, operand 1, single buffered']
    #allocation3 [shape = 's32[1]{0}', space=sflag, size = 0x4, scoped, tag = 'scoped memory for tpu_custom_call.1']
    #allocation4 [shape = 's32[1]{0}', space=sflag, size = 0x4, scoped, tag = 'scoped memory for tpu_custom_call.1']
    #allocation5 [shape = 'u8[65536]{0}', space=vmem, size = 0x10000, scoped, tag = 'input window, operand 2, single buffered']
    #allocation6 [shape = 's32[1]{0}', space=sflag, size = 0x4, scoped, tag = 'scoped memory for tpu_custom_call.1']
    #allocation7 [shape = 'u8[4096]{0}', space=vmem, size = 0x1000, scoped, tag = 'output window, operand 0, single buffered']
    %9 = vsyncpa [#allocation3], 0
    %10 = vsyncpa [#allocation6], 0
    %11 = vsyncpa [#allocation4], 0
    // Predicated region
    $region2: #{tpu_custom_call.1} parent=1 // pred_check
      _
    $region3: #{tpu_custom_call.1} parent=1 // pred_check_branch
      %13 = sbr.rel (0) target = $region5
    $region4: #{tpu_custom_call.1} parent=1 // pred_region
      _
    $region5: #{tpu_custom_call.1} parent=1 // pred_fallthru
      _
    // Predicated region
    $region6: #{tpu_custom_call.1} parent=1 // pred_check
      _
    $region7: #{tpu_custom_call.1} parent=1 // pred_check_branch
      %15 = sbr.rel (0) target = $region9
    $region8: #{tpu_custom_call.1} parent=1 // pred_region
      %17 = vsyncadd [#allocation3], 0
      %s18 = sshll.u32 %s1, 4
      %s19 = int_to_ptr.hbm [resolvable:$true] %s18
      %s20 = sshll.u32 [#allocation2], 4
      %s21 = int_to_ptr.vmem [resolvable:$true] %s20
      %26 = dma.hbm_to_vmem [thread:$0]  %s19, 2048, %s21, [#allocation3], 128, 128, 8
    $region9: #{tpu_custom_call.1} parent=1 // pred_fallthru
      _
    // Predicated region
    $region10: #{tpu_custom_call.1} parent=1 // pred_check
      _
    $region11: #{tpu_custom_call.1} parent=1 // pred_check_branch
      %28 = sbr.rel (0) target = $region13
    $region12: #{tpu_custom_call.1} parent=1 // pred_region
      %30 = vsyncadd [#allocation6], 0
      %s31 = sshll.u32 %s2, 4
      %s32 = int_to_ptr.hbm [resolvable:$true] %s31
      %s33 = sshll.u32 [#allocation5], 4
      %s34 = int_to_ptr.vmem [resolvable:$true] %s33
      %39 = dma.hbm_to_vmem [thread:$0]  %s32, 2048, %s34, [#allocation6], 128, 128, 8
    $region13: #{tpu_custom_call.1} parent=1 // pred_fallthru
      _
    // Predicated region
    $region14: #{tpu_custom_call.1} parent=1 // pred_check
      _
    $region15: #{tpu_custom_call.1} parent=1 // pred_check_branch
      %41 = sbr.rel (0) target = $region17
    $region16: #{tpu_custom_call.1} parent=1 // pred_region
      _
    $region17: #{tpu_custom_call.1} parent=1 // pred_fallthru
      _
    // Predicated region
    $region18: #{tpu_custom_call.1} parent=1 // pred_check
      _
    $region19: #{tpu_custom_call.1} parent=1 // pred_check_branch
      %43 = sbr.rel (0) target = $region21
    $region20: #{tpu_custom_call.1} parent=1 // pred_region
      %45 = dma.done [#allocation3], 2048
    $region21: #{tpu_custom_call.1} parent=1 // pred_fallthru
      _
    // Predicated region
    $region22: #{tpu_custom_call.1} parent=1 // pred_check
      _
    $region23: #{tpu_custom_call.1} parent=1 // pred_check_branch
      %47 = sbr.rel (0) target = $region25
    $region24: #{tpu_custom_call.1} parent=1 // pred_region
      %49 = dma.done [#allocation6], 2048
    $region25: #{tpu_custom_call.1} parent=1 // pred_fallthru
      _
    %v50 = vld [vmem:[%s0] sm:$0xff]
    %v51 = vld [vmem:[%s3] sm:$0xf]
    %53 = vset.pattern.permute.xlu0 0
    %54 = vperm.xlu0 %53, %v50
    %v55 = vpop.permute.xlu0 %54
    %v57 = vperm.slane %v51, 0
    %v58 = vmul.f32 %v55, %v57
    %v59 = vperm.slane %v51, 1
    %v60 = vadd.f32 %v58, %v59
    %v61 = vmax.f32 %v60, 0.0
    %v62 = vld [vmem:[#allocation2] sm:$0xff]
    %v63 = vld [vmem:[#allocation2 + $0x8] sm:$0xff]
    %v64 = vld [vmem:[#allocation2 + $0x10] sm:$0xff]
    %v65 = vld [vmem:[#allocation2 + $0x18] sm:$0xff]
    %v66 = vld [vmem:[#allocation2 + $0x20] sm:$0xff]
    %v67 = vld [vmem:[#allocation2 + $0x28] sm:$0xff]
    %v68 = vld [vmem:[#allocation2 + $0x30] sm:$0xff]
    %v69 = vld [vmem:[#allocation2 + $0x38] sm:$0xff]
    %v70 = vld [vmem:[#allocation2 + $0x40] sm:$0xff]
    %v71 = vld [vmem:[#allocation2 + $0x48] sm:$0xff]
    %v72 = vld [vmem:[#allocation2 + $0x50] sm:$0xff]
    %v73 = vld [vmem:[#allocation2 + $0x58] sm:$0xff]
    %v74 = vld [vmem:[#allocation2 + $0x60] sm:$0xff]
    %v75 = vld [vmem:[#allocation2 + $0x68] sm:$0xff]
    %v76 = vld [vmem:[#allocation2 + $0x70] sm:$0xff]
    %v77 = vld [vmem:[#allocation2 + $0x78] sm:$0xff]
    %v78 = vperm.slane %v51, 2
    %79 = vmatpush.msra.mxu0 %v77
    %80 = vmatpush.msra.mxu0 %v76
    %81 = vmatpush.msra.mxu0 %v75
    %82 = vmatpush.msra.mxu0 %v74
    %83 = vmatpush.msra.mxu0 %v73
    %84 = vmatpush.msra.mxu0 %v72
    %85 = vmatpush.msra.mxu0 %v71
    %86 = vmatpush.msra.mxu0 %v70
    %87 = vmatpush.msra.mxu0 %v69
    %88 = vmatpush.msra.mxu0 %v68
    %89 = vmatpush.msra.mxu0 %v67
    %90 = vmatpush.msra.mxu0 %v66
    %91 = vmatpush.msra.mxu0 %v65
    %92 = vmatpush.msra.mxu0 %v64
    %93 = vmatpush.msra.mxu0 %v63
    %94 = vmatpush.msra.mxu0 %v62
    %95 = vmatmul.f32.gmra.mxu0 %v61
    %v96 = vpop.f32.mrf.mxu0
    %v97 = vadd.f32 %v78, %v96
    %98 = vdwg.mxu0
    %v99 = vmax.f32 %v97, 0.0
    %v100 = vld [vmem:[#allocation5] sm:$0xff]
    %v101 = vld [vmem:[#allocation5 + $0x8] sm:$0xff]
    %v102 = vld [vmem:[#allocation5 + $0x10] sm:$0xff]
    %v103 = vld [vmem:[#allocation5 + $0x18] sm:$0xff]
    %v104 = vld [vmem:[#allocation5 + $0x20] sm:$0xff]
    %v105 = vld [vmem:[#allocation5 + $0x28] sm:$0xff]
    %v106 = vld [vmem:[#allocation5 + $0x30] sm:$0xff]
    %v107 = vld [vmem:[#allocation5 + $0x38] sm:$0xff]
    %v108 = vld [vmem:[#allocation5 + $0x40] sm:$0xff]
    %v109 = vld [vmem:[#allocation5 + $0x48] sm:$0xff]
    %v110 = vld [vmem:[#allocation5 + $0x50] sm:$0xff]
    %v111 = vld [vmem:[#allocation5 + $0x58] sm:$0xff]
    %v112 = vld [vmem:[#allocation5 + $0x60] sm:$0xff]
    %v113 = vld [vmem:[#allocation5 + $0x68] sm:$0xff]
    %v114 = vld [vmem:[#allocation5 + $0x70] sm:$0xff]
    %v115 = vld [vmem:[#allocation5 + $0x78] sm:$0xff]
    %v116 = vperm.slane %v51, 3
    %117 = vmatpush.msra.mxu0 %v115
    %118 = vmatpush.msra.mxu0 %v114
    %119 = vmatpush.msra.mxu0 %v113
    %120 = vmatpush.msra.mxu0 %v112
    %121 = vmatpush.msra.mxu0 %v111
    %122 = vmatpush.msra.mxu0 %v110
    %123 = vmatpush.msra.mxu0 %v109
    %124 = vmatpush.msra.mxu0 %v108
    %125 = vmatpush.msra.mxu0 %v107
    %126 = vmatpush.msra.mxu0 %v106
    %127 = vmatpush.msra.mxu0 %v105
    %128 = vmatpush.msra.mxu0 %v104
    %129 = vmatpush.msra.mxu0 %v103
    %130 = vmatpush.msra.mxu0 %v102
    %131 = vmatpush.msra.mxu0 %v101
    %132 = vmatpush.msra.mxu0 %v100
    %133 = vmatmul.f32.gmra.mxu0 %v99
    %v134 = vpop.f32.mrf.mxu0
    %v135 = vadd.f32 %v116, %v134
    %136 = vdwg.mxu0
    %v137 = vlaneseq
    %v138 = vand.u32 %v137, 127
    %vm139 = vcmp.lt.s32.totalorder %v138, 10
    %v140 = vsel %vm139, %v135, -inf
    %141 = vmax.xlane.f32.xlu0 %v140
    %v142 = vpop.xlane.xlu0 %141
    %v143 = vsub.f32 %v140, %v142
    %v144 = vmul.f32 %v143, 1.442695
    %v145 = vpow.pop %v144
    %146 = vadd.xlane.f32.xlu0 %v145
    %v147 = vpop.xlane.xlu0 %146
    %v148 = vrcp.pop %v147
    %v149 = vmul.f32 %v147, %v148
    %v150 = vsub.f32 1.0, %v149
    %v151 = vmul.f32 %v148, %v150
    %v152 = vadd.f32 %v148, %v151
    %vm153 = vweird.f32 %v147
    %vm154 = vweird.f32 %v148
    %vm155 = vmor %vm153, %vm154
    %v156 = vsel %vm155, %v148, %v152
    %v157 = vand.u32 2147483647, %v147
    %vm158 = vcmp.eq.f32.partialorder %v157, 8.507059e+37
    %v159 = vand.u32 %v147, 2147483648
    %v160 = vor.u32 1.1754944e-38, %v159
    %v161 = vsel %vm158, %v160, %v156
    %v162 = vmul.f32 %v145, %v161
    %vm163 = vcmp.eq.s32.totalorder %v138, 10
    %v164 = vsel %vm163, %v135, 0.0
    %v165 = vadd.f32 %v162, %v164
    %166 = vst [vmem:[#allocation7] sm:$0xff] %v165
    // Predicated region
    $region26: #{tpu_custom_call.1} parent=1 // pred_check
      _
    $region27: #{tpu_custom_call.1} parent=1 // pred_check_branch
      %168 = sbr.rel (0) target = $region29
    $region28: #{tpu_custom_call.1} parent=1 // pred_region
      %170 = vsyncadd [#allocation4], 0
      %s172 = sshll.u32 [#allocation7], 4
      %s173 = int_to_ptr.vmem [resolvable:$true] %s172
      %s174 = sshll.u32 %s4, 4
      %s175 = int_to_ptr.hbm [resolvable:$true] %s174
      %177 = dma.vmem_to_hbm [thread:$0]  %s173, 128, %s175, [#allocation4]
    $region29: #{tpu_custom_call.1} parent=1 // pred_fallthru
      _
    // Predicated region
    $region30: #{tpu_custom_call.1} parent=1 // pred_check
      _
    $region31: #{tpu_custom_call.1} parent=1 // pred_check_branch
      %179 = sbr.rel (0) target = $region33
    $region32: #{tpu_custom_call.1} parent=1 // pred_region
      %181 = dma.done [#allocation4], 128
    $region33: #{tpu_custom_call.1} parent=1 // pred_fallthru
      _
    %182 = vsyncpa [#allocation3], 1
    %183 = vsyncpa [#allocation6], 1
    %184 = vsyncpa [#allocation4], 1

</llo_original>
